<compile_context>
chip_gen: v7x
topology: tpu7x:2x2x1
jax: 0.10.0
libtpu: 0.0.40
codegen_flags: <defaults>
</compile_context>

<pallas_src>
import functools

import jax
import jax.numpy as jnp
from jax.experimental import pallas as pl
from jax.experimental.pallas import tpu as pltpu


def _cdiv(a, b):
    return (a + b - 1) // b


def _round_up(x, m):
    return _cdiv(x, m) * m


def _sdne_loss_kernel(n_rows, n_cols, tm, tc, need_row_mask, need_col_mask,
                      s_ref, q_ref, b_ref, out_ref, acc_ref):
    i = pl.program_id(0)
    c = pl.program_id(1)

    @pl.when(c == 0)
    def _():
        acc_ref[...] = jnp.zeros_like(acc_ref)

    # Stream the similarity tile in its native dtype (single HBM pass, no wrapper
    # copies); cast to bf16 in VMEM so the MXU runs the fast bf16 path, accumulate f32.
    s = s_ref[...].astype(jnp.bfloat16)
    if need_col_mask:
        # Zero columns past the true column count (edge-tile contents are undefined).
        col = c * tc + jax.lax.broadcasted_iota(jnp.int32, (1, tc), 1)
        s = jnp.where(col < n_cols, s, 0)

    # (TM, TC) @ (TC, K+2) on the MXU; contraction depth TC keeps it fed.
    acc_ref[...] += jnp.dot(s, q_ref[...], preferred_element_type=jnp.float32)

    @pl.when(c == pl.num_programs(1) - 1)
    def _():
        prod = acc_ref[...] * b_ref[...]
        if need_row_mask:
            # Drop rows past the true row count (garbage from the edge row tile).
            row = i * tm + jax.lax.broadcasted_iota(jnp.int32, (tm, 1), 0)
            prod = jnp.where(row < n_rows, prod, 0.0)
        out_ref[0] = jnp.full((8, 128), jnp.sum(prod), jnp.float32)


def old_sdne_proximity_loss(positions, similarity, indecies, *, tm=1024, tc=None):
    """JAX/Pallas equivalent of oldSDNEProximityLoss.forward."""
    N, K = positions.shape
    Ns, Nt = similarity.shape
    if Ns != N:
        raise ValueError(f"similarity must have {N} rows, got {Ns}")
    if indecies.shape[0] != N:
        raise ValueError(
            f"len(indecies) must equal N={N} so cut_sim matches the NxN "
            f"distance matrix; got {indecies.shape[0]}")

    p = positions.astype(jnp.float32)
    idx = indecies.astype(jnp.int32)
    sq = jnp.sum(p * p, axis=1)                                           # (N,)
    ones = jnp.ones((N, 1), jnp.float32)

    # Fold the column gather algebraically with one fused segment-sum (O(N*(K+2))).
    payload = jnp.concatenate([p, ones, sq[:, None]], axis=1)             # (N, K+2)
    q_aug = jax.ops.segment_sum(payload, idx, num_segments=Nt)            # (Nt, K+2)
    b = jnp.concatenate([-2.0 * p, sq[:, None], ones], axis=1)            # (N, K+2)
    kc = K + 2

    itemsize = jnp.dtype(similarity.dtype).itemsize
    row_align = max(8, 32 // max(itemsize, 1))     # 8 for f32, 16 for bf16, 32 for 8-bit

    # Pad `similarity` ONLY if a dimension is smaller than one aligned tile (tiny
    # arrays); large inputs are streamed directly and edge tiles are masked in-kernel,
    # so no padded/converted copy of the big array is ever materialized in HBM.
    pad_r = (_round_up(N, row_align) - N) if N < row_align else 0
    pad_c = (_round_up(Nt, 128) - Nt) if Nt < 128 else 0
    s_in = similarity
    if pad_r or pad_c:
        s_in = jnp.pad(similarity, ((0, pad_r), (0, pad_c)))
    n_s, nt_s = N + pad_r, Nt + pad_c

    # Tile sizes: target ~8 MiB similarity tiles per grid step.
    if tc is None:
        tc = 4096 if itemsize <= 2 else 2048
    tm_eff = min(_round_up(tm, row_align), _round_up(n_s, row_align))
    if _cdiv(n_s, tm_eff) < 2 and _round_up(n_s, row_align) >= 2 * row_align:
        # Guarantee >= 2 row tiles so both v7x TensorCores get work ("parallel" axis).
        tm_eff = _round_up(_cdiv(n_s, 2), row_align)
    tc_eff = min(_round_up(tc, 128), _round_up(nt_s, 128))
    gi = _cdiv(n_s, tm_eff)
    gc = _cdiv(nt_s, tc_eff)

    # Small operands: pad to the grid extent (cheap). Qaug feeds the MXU in bf16; B
    # stays f32 for the final weighted reduction.
    q_p = jnp.pad(q_aug, ((0, gc * tc_eff - Nt), (0, 0))).astype(jnp.bfloat16)
    b_p = jnp.pad(b, ((0, gi * tm_eff - N), (0, 0)))

    kernel = functools.partial(
        _sdne_loss_kernel, n_s, nt_s, tm_eff, tc_eff,
        gi * tm_eff > n_s, gc * tc_eff > nt_s)

    partials = pl.pallas_call(
        kernel,
        out_shape=jax.ShapeDtypeStruct((gi, 8, 128), jnp.float32),
        grid_spec=pltpu.PrefetchScalarGridSpec(
            num_scalar_prefetch=0,
            grid=(gi, gc),
            in_specs=[
                pl.BlockSpec((tm_eff, tc_eff), lambda i, c: (i, c)),  # similarity tile
                pl.BlockSpec((tc_eff, kc), lambda i, c: (c, 0)),      # Qaug tile (bf16)
                pl.BlockSpec((tm_eff, kc), lambda i, c: (i, 0)),      # B tile (f32)
            ],
            out_specs=pl.BlockSpec((1, 8, 128), lambda i, c: (i, 0, 0)),
            scratch_shapes=[pltpu.VMEM((tm_eff, kc), jnp.float32)],
        ),
        compiler_params=pltpu.CompilerParams(
            dimension_semantics=("parallel", "arbitrary"),
            vmem_limit_bytes=48 * 1024 * 1024,
        ),
    )(s_in, q_p, b_p)

    # One scalar per row tile (broadcast across an (8,128) block); tiny final sum.
    return jnp.sum(partials[:, 0, 0])


def _reference_loss(positions, similarity, indecies):
    """Pure-JAX reference for correctness checking."""
    diff = positions[:, None, :] - positions[None, :, :]
    dist = jnp.sum(diff * diff, axis=-1)                 # (N, N) squared Euclidean
    cut_sim = similarity[:, indecies]                    # (N, N)
    return jnp.sum(dist * cut_sim)


if __name__ == "__main__":
    key = jax.random.PRNGKey(0)
    k_pos, k_sim, k_idx = jax.random.split(key, 3)

    # Small shapes consistent with the module: N nodes, K embed dim, N_total graph nodes.
    N, K, N_total = 8, 32, 16
    positions = jax.random.normal(k_pos, (N, K), dtype=jnp.float32)
    similarity = jax.random.uniform(k_sim, (N, N_total), dtype=jnp.float32)
    indecies = jax.random.randint(k_idx, (N,), 0, N_total, dtype=jnp.int32)

    loss = old_sdne_proximity_loss(positions, similarity, indecies)
    jax.block_until_ready(loss)
    ref = _reference_loss(positions, similarity, indecies)
    assert jnp.allclose(loss, ref, rtol=2e-2, atol=1e-2), (loss, ref)

    # Non-divisible shapes + multi-tile grid: exercises unpadded streaming of the big
    # array, in-kernel row/column edge masking, accumulator init/finalize and the
    # per-row-tile partial outputs.
    k2a, k2b, k2c = jax.random.split(jax.random.PRNGKey(1), 3)
    N2, K2, Nt2 = 200, 24, 300
    p2 = jax.random.normal(k2a, (N2, K2), dtype=jnp.float32)
    s2 = jax.random.uniform(k2b, (N2, Nt2), dtype=jnp.float32)
    i2 = jax.random.randint(k2c, (N2,), 0, Nt2, dtype=jnp.int32)

    loss2 = old_sdne_proximity_loss(p2, s2, i2, tm=64, tc=128)
    jax.block_until_ready(loss2)
    ref2 = _reference_loss(p2, s2, i2)
    assert jnp.allclose(loss2, ref2, rtol=2e-2, atol=1e-1), (loss2, ref2)

    # bf16 similarity path (halves the dominant HBM stream, default tiling/heuristics).
    loss3 = old_sdne_proximity_loss(p2, s2.astype(jnp.bfloat16), i2)
    jax.block_until_ready(loss3)
    assert jnp.allclose(loss3, ref2, rtol=3e-2, atol=1.0), (loss3, ref2)

    print("KERNEL_OK")
</pallas_src>

<mosaic_0001>
module attributes {stable_mosaic.version = 11 : i64} {
  func.func @_sdne_loss_kernel(%arg0: i32, %arg1: i32, %arg2: memref<8x128xf32, #tpu.memory_space<vmem>>, %arg3: memref<128x34xbf16, #tpu.memory_space<vmem>>, %arg4: memref<8x34xf32, #tpu.memory_space<vmem>>, %arg5: memref<1x8x128xf32, #tpu.memory_space<vmem>>, %arg6: memref<8x34xf32, #tpu.memory_space<vmem>>) attributes {dimension_semantics = [#tpu.dimension_semantics<parallel>, #tpu.dimension_semantics<arbitrary>], iteration_bounds = array<i64: 1, 1>, scalar_prefetch = 0 : i64, scratch_operands = 1 : i64, tpu.core_type = #tpu.core_type<tc>, window_params = [{transform_indices = @transform_0, window_bounds = array<i64: 8, 128>}, {transform_indices = @transform_1, window_bounds = array<i64: 128, 34>}, {transform_indices = @transform_2, window_bounds = array<i64: 8, 34>}, {transform_indices = @transform_3, window_bounds = array<i64: 1, 8, 128>}]} {
    %c0_i32 = arith.constant 0 : i32
    %0 = arith.cmpi eq, %arg1, %c0_i32 : i32
    %1 = arith.extui %0 : i1 to i32
    %c0_i32_0 = arith.constant 0 : i32
    %2 = arith.cmpi ne, %1, %c0_i32_0 : i32
    scf.if %2 {
      %cst_10 = arith.constant 0.000000e+00 : f32
      %13 = vector.broadcast %cst_10 : f32 to vector<8x34xf32>
      %c0_11 = arith.constant 0 : index
      %c0_12 = arith.constant 0 : index
      %14 = vector.load %arg6[%c0_11, %c0_12] : memref<8x34xf32, #tpu.memory_space<vmem>>, vector<8x34xf32>
      tpu.vector_store %arg6[%c0_11, %c0_12], %13 {strides = array<i32>} : memref<8x34xf32, #tpu.memory_space<vmem>>, vector<8x34xf32>,
    } else {
    }
    %c0 = arith.constant 0 : index
    %c0_1 = arith.constant 0 : index
    %3 = vector.load %arg2[%c0, %c0_1] : memref<8x128xf32, #tpu.memory_space<vmem>>, vector<8x128xf32>
    %4 = arith.truncf %3 : vector<8x128xf32> to vector<8x128xbf16>
    %c0_2 = arith.constant 0 : index
    %c0_3 = arith.constant 0 : index
    %5 = vector.load %arg6[%c0_2, %c0_3] : memref<8x34xf32, #tpu.memory_space<vmem>>, vector<8x34xf32>
    %c0_4 = arith.constant 0 : index
    %c0_5 = arith.constant 0 : index
    %6 = vector.load %arg3[%c0_4, %c0_5] : memref<128x34xbf16, #tpu.memory_space<vmem>>, vector<128x34xbf16>
    %cst = arith.constant dense<0.000000e+00> : vector<8x34xf32>
    %7 = tpu.matmul %4, %6, %cst {dimension_numbers = #tpu.dot_dimension_numbers<[1], [0], [0], [1], [0, 0, 1, 1], [], []>} : vector<8x128xbf16>, vector<128x34xbf16>, vector<8x34xf32> -> vector<8x34xf32>
    %8 = arith.addf %5, %7 : vector<8x34xf32>
    %c0_6 = arith.constant 0 : index
    %c0_7 = arith.constant 0 : index
    %9 = vector.load %arg6[%c0_6, %c0_7] : memref<8x34xf32, #tpu.memory_space<vmem>>, vector<8x34xf32>
    tpu.vector_store %arg6[%c0_6, %c0_7], %8 {strides = array<i32>} : memref<8x34xf32, #tpu.memory_space<vmem>>, vector<8x34xf32>,
    %c0_i32_8 = arith.constant 0 : i32
    %10 = arith.cmpi eq, %arg1, %c0_i32_8 : i32
    %11 = arith.extui %10 : i1 to i32
    %c0_i32_9 = arith.constant 0 : i32
    %12 = arith.cmpi ne, %11, %c0_i32_9 : i32
    scf.if %12 {
      %c0_10 = arith.constant 0 : index
      %c0_11 = arith.constant 0 : index
      %13 = vector.load %arg6[%c0_10, %c0_11] : memref<8x34xf32, #tpu.memory_space<vmem>>, vector<8x34xf32>
      %c0_12 = arith.constant 0 : index
      %c0_13 = arith.constant 0 : index
      %14 = vector.load %arg4[%c0_12, %c0_13] : memref<8x34xf32, #tpu.memory_space<vmem>>, vector<8x34xf32>
      %15 = arith.mulf %13, %14 : vector<8x34xf32>
      %16 = vector.shape_cast %15 : vector<8x34xf32> to vector<1x8x34xf32>
      %cst_14 = arith.constant dense<0.000000e+00> : vector<1xf32>
      %17 = vector.multi_reduction <add>, %16, %cst_14 [1, 2] : vector<1x8x34xf32> to vector<1xf32>
      %18 = vector.shape_cast %17 : vector<1xf32> to vector<1x1x1xf32>
      %19 = vector.extract %18[0, 0, 0] : f32 from vector<1x1x1xf32>
      %20 = vector.broadcast %19 : f32 to vector<8x128xf32>
      %c0_15 = arith.constant 0 : index
      %c0_16 = arith.constant 0 : index
      %c0_17 = arith.constant 0 : index
      %21 = vector.load %arg5[%c0_15, %c0_16, %c0_17] : memref<1x8x128xf32, #tpu.memory_space<vmem>>, vector<1x8x128xf32>
      %22 = vector.shape_cast %21 : vector<1x8x128xf32> to vector<8x128xf32>
      %23 = vector.shape_cast %20 : vector<8x128xf32> to vector<1x8x128xf32>
      tpu.vector_store %arg5[%c0_15, %c0_16, %c0_17], %23 {strides = array<i32>} : memref<1x8x128xf32, #tpu.memory_space<vmem>>, vector<1x8x128xf32>,
    } else {
    }
    return
  }
  func.func @transform_0(%arg0: i32, %arg1: i32) -> (i32, i32) {
    %c0_i32 = arith.constant 0 : i32
    return %arg0, %arg1 : i32, i32
  }
  func.func @transform_1(%arg0: i32, %arg1: i32) -> (i32, i32) {
    %c0_i32 = arith.constant 0 : i32
    %c0_i32_0 = arith.constant 0 : i32
    return %arg1, %c0_i32 : i32, i32
  }
  func.func @transform_2(%arg0: i32, %arg1: i32) -> (i32, i32) {
    %c0_i32 = arith.constant 0 : i32
    %c0_i32_0 = arith.constant 0 : i32
    return %arg0, %c0_i32 : i32, i32
  }
  func.func @transform_3(%arg0: i32, %arg1: i32) -> (i32, i32, i32) {
    %c0_i32 = arith.constant 0 : i32
    %c0_i32_0 = arith.constant 0 : i32
    %c0_i32_1 = arith.constant 0 : i32
    return %arg0, %c0_i32, %c0_i32_0 : i32, i32, i32
  }
}

</mosaic_0001>

<llo_original>
// kernel: tpu_custom_call.1
$region0: #{tpu_custom_call.1}
  #allocation0 [shape = 'u32[]', space=smem, size = 0x4, offset = 0x4, fixed_abs, tag = 'smem constant byte address 0x4 - core index']
  #allocation1 [shape = 'u32[144,128]{1,0:T(1,128)}', space=vmem, size = 0x12000, scoped, tag = 'internal scratch']
  #allocation2 [shape = 'f32[8,34]{1,0:T(8,128)}', space=vmem, size = 0x1000, scoped, tag = 'scratch operand']
  %s0 = inlined_call_operand.vmem [shape: f32[8,128], index: 0, kind: input, shape index: {}]
  %s1 = inlined_call_operand.vmem [shape: bf16[128,34], index: 1, kind: input, shape index: {}]
  %s2 = inlined_call_operand.vmem [shape: f32[8,34], index: 2, kind: input, shape index: {}]
  %s3 = inlined_call_operand.hbm [shape: f32[1,8,128], index: 3, kind: output, shape index: {}]
  %s4 = sld [smem:[#allocation0]]
  $region30: #{tpu_custom_call.1} parent=0
    _
  %s6 = ssub.s32 1, %s4
  %s7 = scalar_select 0, %s6, %s4
  $region1: #{tpu_custom_call.1} parent=0
    #allocation3 [shape = 'u8[4096]{0}', space=vmem, size = 0x1000, scoped, tag = 'output window, operand 0, single buffered']
    #allocation4 [shape = 's32[1]{0}', space=sflag, size = 0x4, scoped, tag = 'scoped memory for tpu_custom_call.1']
    %8 = vsyncpa [#allocation4], 0
    // Predicated region
    $region2: #{tpu_custom_call.1} parent=1 // pred_check
      _
    $region3: #{tpu_custom_call.1} parent=1 // pred_check_branch
      %10 = sbr.rel (0) target = $region5
    $region4: #{tpu_custom_call.1} parent=1 // pred_region
      _
    $region5: #{tpu_custom_call.1} parent=1 // pred_fallthru
      _
    // Predicated region
    $region6: #{tpu_custom_call.1} parent=1 // pred_check
      _
    $region7: #{tpu_custom_call.1} parent=1 // pred_check_branch
      %12 = sbr.rel (0) target = $region9
    $region8: #{tpu_custom_call.1} parent=1 // pred_region
      _
    $region9: #{tpu_custom_call.1} parent=1 // pred_fallthru
      _
    // Predicated region
    $region10: #{tpu_custom_call.1} parent=1 // pred_check
      _
    $region11: #{tpu_custom_call.1} parent=1 // pred_check_branch
      %14 = sbr.rel (0) target = $region13
    $region12: #{tpu_custom_call.1} parent=1 // pred_region
      _
    $region13: #{tpu_custom_call.1} parent=1 // pred_fallthru
      _
    %p16 = scmp.eq.s32.totalorder 0, 0
    // Predicated region
    $region14: #{tpu_custom_call.1} parent=1 // pred_check
      %p17 = pneg %p16
    $region15: #{tpu_custom_call.1} parent=1 // pred_check_branch
      %19 = sbr.rel (%p17) target = $region17
    $region16: #{tpu_custom_call.1} parent=1 // pred_region
      %vm20 = vcmask 277504
      %21 = vst.msk [vmem:[#allocation2] sm:$0xff] %vm20, 0.0
    $region17: #{tpu_custom_call.1} parent=1 // pred_fallthru
      _
    %v22 = vld [vmem:[%s0] sm:$0xff]
    %v23 = vpack.c.bf16 %v22, %v22
    %v24 = vld [vmem:[#allocation2] sm:$0xff]
    %v25 = vld [vmem:[%s1] sm:$0xf]
    %v26 = vld [vmem:[%s1 + $0x4] sm:$0xf]
    %v27 = vld [vmem:[%s1 + $0x8] sm:$0xf]
    %v28 = vld [vmem:[%s1 + $0xc] sm:$0xf]
    %v29 = vld [vmem:[%s1 + $0x10] sm:$0xf]
    %v30 = vld [vmem:[%s1 + $0x14] sm:$0xf]
    %v31 = vld [vmem:[%s1 + $0x18] sm:$0xf]
    %v32 = vld [vmem:[%s1 + $0x1c] sm:$0xf]
    %v33 = vld [vmem:[%s1 + $0x20] sm:$0xf]
    %v34 = vld [vmem:[%s1 + $0x24] sm:$0xf]
    %v35 = vld [vmem:[%s1 + $0x28] sm:$0xf]
    %v36 = vld [vmem:[%s1 + $0x2c] sm:$0xf]
    %v37 = vld [vmem:[%s1 + $0x30] sm:$0xf]
    %v38 = vld [vmem:[%s1 + $0x34] sm:$0xf]
    %v39 = vld [vmem:[%s1 + $0x38] sm:$0xf]
    %v40 = vld [vmem:[%s1 + $0x3c] sm:$0xf]
    %v57 = vunpack.c.l.b16 %v25
    %v58 = vunpack.c.l.b16 %v26
    %v59 = vunpack.c.l.b16 %v27
    %v60 = vunpack.c.l.b16 %v28
    %v61 = vunpack.c.l.b16 %v29
    %v62 = vunpack.c.l.b16 %v30
    %v63 = vunpack.c.l.b16 %v31
    %v64 = vunpack.c.l.b16 %v32
    %v65 = vunpack.c.l.b16 %v33
    %v66 = vunpack.c.l.b16 %v34
    %v67 = vunpack.c.l.b16 %v35
    %v68 = vunpack.c.l.b16 %v36
    %v69 = vunpack.c.l.b16 %v37
    %v70 = vunpack.c.l.b16 %v38
    %v71 = vunpack.c.l.b16 %v39
    %v72 = vunpack.c.l.b16 %v40
    %v73 = vpack.c.b16 %v58, %v57
    %v74 = vpack.c.b16 %v60, %v59
    %v75 = vpack.c.b16 %v62, %v61
    %v76 = vpack.c.b16 %v64, %v63
    %v77 = vpack.c.b16 %v66, %v65
    %v78 = vpack.c.b16 %v68, %v67
    %v79 = vpack.c.b16 %v70, %v69
    %v80 = vpack.c.b16 %v72, %v71
    %89 = vmatprep.subr.bf16.mxu0 0
    %90 = vmatpush1.bf16.msra.mxu0 %v73
    %91 = vmatprep.subr.bf16.mxu0 0
    %92 = vmatpush1.bf16.msra.mxu0 %v74
    %93 = vmatprep.subr.bf16.mxu0 0
    %94 = vmatpush1.bf16.msra.mxu0 %v75
    %95 = vmatprep.subr.bf16.mxu0 0
    %96 = vmatpush1.bf16.msra.mxu0 %v76
    %97 = vmatprep.subr.bf16.mxu0 0
    %98 = vmatpush1.bf16.msra.mxu0 %v77
    %99 = vmatprep.subr.bf16.mxu0 0
    %100 = vmatpush1.bf16.msra.mxu0 %v78
    %101 = vmatprep.subr.bf16.mxu0 0
    %102 = vmatpush1.bf16.msra.mxu0 %v79
    %103 = vmatprep.subr.bf16.mxu0 0
    %104 = vmatpush1.bf16.msra.mxu0 %v80
    %105 = vmatprep.subr.bf16.mxu0 0
    %106 = vmatpush1.bf16.msra.mxu0 0
    %107 = vmatprep.subr.bf16.mxu0 0
    %108 = vmatpush1.bf16.msra.mxu0 0
    %109 = vmatprep.subr.bf16.mxu0 0
    %110 = vmatpush1.bf16.msra.mxu0 0
    %111 = vmatprep.subr.bf16.mxu0 0
    %112 = vmatpush1.bf16.msra.mxu0 0
    %113 = vmatprep.subr.bf16.mxu0 0
    %114 = vmatpush1.bf16.msra.mxu0 0
    %115 = vmatprep.subr.bf16.mxu0 0
    %116 = vmatpush1.bf16.msra.mxu0 0
    %117 = vmatprep.subr.bf16.mxu0 0
    %118 = vmatpush1.bf16.msra.mxu0 0
    %119 = vmatprep.subr.bf16.mxu0 0
    %120 = vmatpush1.bf16.msra.mxu0 0
    %121 = vmatprep.mubr.bf16.mxu0 0
    %122 = vmatmul.mubr.bf16.gmra.mrb[0].mxu0 %v23
    %v123 = vpop.f32.mrb[0].mxu0
    %v124 = vadd.f32 0.0, %v123
    %v125 = vpop.f32.mrb[0].mxu0
    %v126 = vpop.f32.mrb[0].mxu0
    %v127 = vpop.f32.mrb[0].mxu0
    %128 = vdwg.mxu0
    %v129 = vadd.f32 %v24, %v124
    %vm130 = vcmask 277504
    %131 = vst.msk [vmem:[#allocation2] sm:$0xff] %vm130, %v129
    // Predicated region
    $region18: #{tpu_custom_call.1} parent=1 // pred_check
      %p132 = pneg %p16
    $region19: #{tpu_custom_call.1} parent=1 // pred_check_branch
      %134 = sbr.rel (%p132) target = $region21
    $region20: #{tpu_custom_call.1} parent=1 // pred_region
      %v135 = vld [vmem:[#allocation2] sm:$0xff]
      %v136 = vld [vmem:[%s2] sm:$0xff]
      %v137 = vmul.f32 %v135, %v136
      %v138 = vsel %vm130, %v137, 0.0
      %139 = vadd.xlane.f32.xlu0 %v138
      %v140 = vpop.xlane.xlu0 %139
      %v141 = vrot.slane %v140, 4
      %v142 = vadd.f32 %v140, %v141
      %v143 = vrot.slane %v142, 2
      %v144 = vadd.f32 %v142, %v143
      %v145 = vrot.slane %v144, 1
      %v146 = vadd.f32 %v144, %v145
      %s147 = vtos %v146
      %v148 = vstv %s147
      %149 = vst [vmem:[#allocation3] sm:$0xff] %v148
    $region21: #{tpu_custom_call.1} parent=1 // pred_fallthru
      _
    // Predicated region
    $region22: #{tpu_custom_call.1} parent=1 // pred_check
      _
    $region23: #{tpu_custom_call.1} parent=1 // pred_check_branch
      %151 = sbr.rel (0) target = $region25
    $region24: #{tpu_custom_call.1} parent=1 // pred_region
      %s153 = ssub.s32 128, 128
      %154 = vsyncadd [#allocation4], %s153
      %s156 = sshll.u32 [#allocation3], 4
      %s157 = int_to_ptr.vmem [resolvable:$true] %s156
      %159 = dma.vmem_to_hbm [thread:$0]  %s157, 128, %s3, [#allocation4]
    $region25: #{tpu_custom_call.1} parent=1 // pred_fallthru
      _
    // Predicated region
    $region26: #{tpu_custom_call.1} parent=1 // pred_check
      _
    $region27: #{tpu_custom_call.1} parent=1 // pred_check_branch
      %161 = sbr.rel (0) target = $region29
    $region28: #{tpu_custom_call.1} parent=1 // pred_region
      %162 = dma.done [#allocation4], 128
    $region29: #{tpu_custom_call.1} parent=1 // pred_fallthru
      _
    %163 = vsyncpa [#allocation4], 1

</llo_original>
